<compile_context>
chip_gen: v7x
topology: tpu7x:2x2x1
jax: 0.10.0
libtpu: 0.0.40
codegen_flags: <defaults>
</compile_context>

<pallas_src>
import jax
import jax.numpy as jnp
from jax.experimental import pallas as pl
from jax.experimental.pallas import tpu as pltpu

_HP = 128          # padded hidden width (real hidden = 64)
_NP = 128          # padded fused-head width inside the kernel (actor | critic | zeros)
_NEG_BIG = -1.0e30 # effectively -inf for softmax masking, avoids inf arithmetic


def _round_up(n, m):
    return ((n + m - 1) // m) * m


def _make_kernel(num_actions, out_width):
    A = num_actions
    W = out_width

    def kernel(x_ref, w1_ref, wh_ref, b_ref, out_ref):
        # activations cast to bf16 for the MXU; accumulation + all elementwise in f32
        x = x_ref[...].astype(jnp.bfloat16)               # [TB, D]
        b_fc = b_ref[0:1, :]                               # [1, 128] f32
        b_hd = b_ref[1:2, :]                               # [1, 128] f32

        # fc + relu (padded hidden cols are exactly 0 after relu: zero W, zero b)
        h = jnp.dot(x, w1_ref[...], preferred_element_type=jnp.float32) + b_fc
        h = jnp.maximum(h, 0.0)                            # [TB, 128] f32

        # fused actor+critic head: one lane-full MXU pass
        head = jnp.dot(h.astype(jnp.bfloat16), wh_ref[...],
                       preferred_element_type=jnp.float32) + b_hd   # [TB, 128] f32

        # softmax over actor lanes only (mask critic + padding lanes out of max/sum)
        col = jax.lax.broadcasted_iota(jnp.int32, head.shape, 1)
        logits = jnp.where(col < A, head, _NEG_BIG)
        m = jnp.max(logits, axis=-1, keepdims=True)
        e = jnp.exp(logits - m)                            # masked lanes underflow to 0
        s = jnp.sum(e, axis=-1, keepdims=True)
        probs = e / s                                      # EXACT normalization

        # lanes [0,A) = probs, lane A = critic value, rest 0; store only first W lanes
        slab = jnp.where(col == A, head, probs)            # [TB, 128]
        out_ref[...] = slab[:, :W]                         # [TB, W] narrow writeback

    return kernel


def pack_params(params):
    """One-time packing/padding of parameters into kernel operands.

    Call at init / after each parameter update, NOT on every forward call."""
    f32, bf16 = jnp.float32, jnp.bfloat16
    D, H = params["w_fc"].shape
    A = params["w_actor"].shape[1]
    assert H <= _HP and A + 1 <= _NP

    w1 = jnp.zeros((D, _HP), bf16).at[:, :H].set(params["w_fc"].astype(bf16))
    w_heads = (
        jnp.zeros((_HP, _NP), bf16)
        .at[:H, :A].set(params["w_actor"].astype(bf16))
        .at[:H, A:A + 1].set(params["w_critic"].astype(bf16))
    )
    b_fc = jnp.zeros((_NP,), f32).at[:H].set(params["b_fc"].astype(f32))
    b_hd = (
        jnp.zeros((_NP,), f32)
        .at[:A].set(params["b_actor"].astype(f32))
        .at[A].set(params["b_critic"].astype(f32)[0])
    )
    biases = jnp.stack([b_fc, b_hd], axis=0)               # [2, 128] f32
    return {"w1": w1, "w_heads": w_heads, "biases": biases, "num_actions": A}


def a2c_forward(x, packed, *, block_b=2048):
    """x: [B, input_dim] float32 (or bf16). packed: output of pack_params().
    Returns (action_probs [B, A] f32, value [B, 1] f32)."""
    B, D = x.shape
    A = packed["num_actions"]
    W = _round_up(A + 1, 8)                                # narrow output width

    # --- batch tile selection ---
    # biggest tile <= block_b, but keep >=2 grid blocks when B >= 16 so both v7x
    # TensorCores get work (no-op on single-TC v5e/v6e).
    if B >= 16:
        TB = min(block_b, _round_up(pl.cdiv(B, 2), 8))
    else:
        TB = _round_up(B, 8)
    # clamp so double-buffered x/out tiles stay well inside v5e's 16 MiB scoped VMEM
    bytes_per_row = D * 4 + W * 4
    max_rows = (6 * 1024 * 1024) // (2 * bytes_per_row)
    TB = max(8, min(TB, max(8, (max_rows // 8) * 8)))
    n_blocks = pl.cdiv(B, TB)   # ragged last block handled by Pallas; no x padding copy

    grid_spec = pltpu.PrefetchScalarGridSpec(
        num_scalar_prefetch=0,
        grid=(n_blocks,),
        in_specs=[
            pl.BlockSpec((TB, D), lambda i: (i, 0)),       # activations: tiled over batch
            pl.BlockSpec((D, _HP), lambda i: (0, 0)),      # weights stay VMEM-resident
            pl.BlockSpec((_HP, _NP), lambda i: (0, 0)),
            pl.BlockSpec((2, _NP), lambda i: (0, 0)),
        ],
        out_specs=pl.BlockSpec((TB, W), lambda i: (i, 0)),
    )

    out = pl.pallas_call(
        _make_kernel(A, W),
        out_shape=jax.ShapeDtypeStruct((B, W), jnp.float32),
        grid_spec=grid_spec,
        compiler_params=pltpu.CompilerParams(
            dimension_semantics=("parallel",),             # 2 TCs on v7x; no-op on v5e/v6e
        ),
    )(x, packed["w1"], packed["w_heads"], packed["biases"])

    probs = out[:, :A]
    value = out[:, A:A + 1]
    return probs, value


def init_params(key, input_dim, num_actions, hidden=64):
    """Deterministic parameter init mirroring nn.Linear shapes (stored as [in, out])."""
    k1, k2, k3, k4, k5, k6 = jax.random.split(key, 6)

    def lin(kw, kb, fan_in, fan_out):
        bound = 1.0 / jnp.sqrt(fan_in)
        w = jax.random.uniform(kw, (fan_in, fan_out), jnp.float32, -bound, bound)
        b = jax.random.uniform(kb, (fan_out,), jnp.float32, -bound, bound)
        return w, b

    w_fc, b_fc = lin(k1, k2, input_dim, hidden)
    w_actor, b_actor = lin(k3, k4, hidden, num_actions)
    w_critic, b_critic = lin(k5, k6, hidden, 1)
    return {
        "w_fc": w_fc, "b_fc": b_fc,
        "w_actor": w_actor, "b_actor": b_actor,
        "w_critic": w_critic, "b_critic": b_critic,
    }


if __name__ == "__main__":
    key = jax.random.PRNGKey(0)
    kx, kp = jax.random.split(key)

    batch = 8
    input_dim = 32
    num_actions = 4

    x = jax.random.normal(kx, (batch, input_dim), jnp.float32)
    params = init_params(kp, input_dim, num_actions)
    packed = pack_params(params)          # one-time packing (amortized across calls)

    probs, value = a2c_forward(x, packed)
    jax.block_until_ready((probs, value))

    # Reference in plain JAX (f32) to check kernel semantics.
    h_ref = jnp.maximum(x @ params["w_fc"] + params["b_fc"], 0.0)
    probs_ref = jax.nn.softmax(h_ref @ params["w_actor"] + params["b_actor"], axis=-1)
    value_ref = h_ref @ params["w_critic"] + params["b_critic"]

    assert probs.shape == (batch, num_actions) and value.shape == (batch, 1)
    # bf16 MXU operands (f32 accumulation) -> loosened tolerance vs the f32 reference.
    assert jnp.allclose(probs, probs_ref, atol=5e-2, rtol=5e-2), "actor mismatch"
    assert jnp.allclose(value, value_ref, atol=5e-2, rtol=5e-2), "critic mismatch"
    # exact (non-approx) normalization -> row sums are 1 within f32 rounding.
    assert jnp.allclose(jnp.sum(probs, axis=-1), 1.0, atol=1e-3), "softmax not normalized"

    print("KERNEL_OK")
</pallas_src>

<mosaic_0001>
module attributes {stable_mosaic.version = 11 : i64} {
  func.func @kernel(%arg0: i32, %arg1: memref<8x32xf32, #tpu.memory_space<vmem>>, %arg2: memref<32x128xbf16, #tpu.memory_space<vmem>>, %arg3: memref<128x128xbf16, #tpu.memory_space<vmem>>, %arg4: memref<2x128xf32, #tpu.memory_space<vmem>>, %arg5: memref<8x8xf32, #tpu.memory_space<vmem>>) attributes {dimension_semantics = [#tpu.dimension_semantics<parallel>], iteration_bounds = array<i64: 1>, scalar_prefetch = 0 : i64, scratch_operands = 0 : i64, tpu.core_type = #tpu.core_type<tc>, window_params = [{transform_indices = @transform_0, window_bounds = array<i64: 8, 32>}, {pipeline_mode = #tpu.pipeline_mode<synchronous>, transform_indices = @transform_1, window_bounds = array<i64: 32, 128>}, {pipeline_mode = #tpu.pipeline_mode<synchronous>, transform_indices = @transform_2, window_bounds = array<i64: 128, 128>}, {pipeline_mode = #tpu.pipeline_mode<synchronous>, transform_indices = @transform_3, window_bounds = array<i64: 2, 128>}, {transform_indices = @transform_4, window_bounds = array<i64: 8, 8>}]} {
    %c0 = arith.constant 0 : index
    %c0_0 = arith.constant 0 : index
    %0 = vector.load %arg1[%c0, %c0_0] : memref<8x32xf32, #tpu.memory_space<vmem>>, vector<8x32xf32>
    %1 = arith.truncf %0 : vector<8x32xf32> to vector<8x32xbf16>
    %c0_1 = arith.constant 0 : index
    %c0_2 = arith.constant 0 : index
    %2 = vector.load %arg4[%c0_1, %c0_2] : memref<2x128xf32, #tpu.memory_space<vmem>>, vector<1x128xf32>
    %c1 = arith.constant 1 : index
    %c0_3 = arith.constant 0 : index
    %3 = vector.load %arg4[%c1, %c0_3] : memref<2x128xf32, #tpu.memory_space<vmem>>, vector<1x128xf32>
    %c0_4 = arith.constant 0 : index
    %c0_5 = arith.constant 0 : index
    %4 = vector.load %arg2[%c0_4, %c0_5] : memref<32x128xbf16, #tpu.memory_space<vmem>>, vector<32x128xbf16>
    %cst = arith.constant dense<0.000000e+00> : vector<8x128xf32>
    %5 = tpu.matmul %1, %4, %cst {dimension_numbers = #tpu.dot_dimension_numbers<[1], [0], [0], [1], [0, 0, 1, 1], [], []>} : vector<8x32xbf16>, vector<32x128xbf16>, vector<8x128xf32> -> vector<8x128xf32>
    %6 = vector.broadcast %2 : vector<1x128xf32> to vector<8x128xf32>
    %7 = arith.addf %5, %6 : vector<8x128xf32>
    %cst_6 = arith.constant 0.000000e+00 : f32
    %8 = vector.broadcast %cst_6 : f32 to vector<8x128xf32>
    %9 = arith.maximumf %7, %8 : vector<8x128xf32>
    %10 = arith.truncf %9 : vector<8x128xf32> to vector<8x128xbf16>
    %c0_7 = arith.constant 0 : index
    %c0_8 = arith.constant 0 : index
    %11 = vector.load %arg3[%c0_7, %c0_8] : memref<128x128xbf16, #tpu.memory_space<vmem>>, vector<128x128xbf16>
    %cst_9 = arith.constant dense<0.000000e+00> : vector<8x128xf32>
    %12 = tpu.matmul %10, %11, %cst_9 {dimension_numbers = #tpu.dot_dimension_numbers<[1], [0], [0], [1], [0, 0, 1, 1], [], []>} : vector<8x128xbf16>, vector<128x128xbf16>, vector<8x128xf32> -> vector<8x128xf32>
    %13 = vector.broadcast %3 : vector<1x128xf32> to vector<8x128xf32>
    %14 = arith.addf %12, %13 : vector<8x128xf32>
    %15 = tpu.iota {dimensions = array<i32: 1>} : vector<8x128xi32>
    %c4_i32 = arith.constant 4 : i32
    %16 = vector.broadcast %c4_i32 : i32 to vector<8x128xi32>
    %17 = arith.cmpi slt, %15, %16 : vector<8x128xi32>
    %cst_10 = arith.constant -1.000000e+30 : f32
    %18 = vector.broadcast %cst_10 : f32 to vector<8x128xf32>
    %19 = arith.select %17, %14, %18 : vector<8x128xi1>, vector<8x128xf32>
    %cst_11 = arith.constant dense<0xFF800000> : vector<8xf32>
    %20 = vector.multi_reduction <maximumf>, %19, %cst_11 [1] : vector<8x128xf32> to vector<8xf32>
    %21 = vector.shape_cast %20 : vector<8xf32> to vector<8x1xf32>
    %22 = vector.broadcast %21 : vector<8x1xf32> to vector<8x128xf32>
    %23 = arith.subf %19, %22 : vector<8x128xf32>
    %24 = math.exp %23 : vector<8x128xf32>
    %cst_12 = arith.constant dense<0.000000e+00> : vector<8xf32>
    %25 = vector.multi_reduction <add>, %24, %cst_12 [1] : vector<8x128xf32> to vector<8xf32>
    %26 = vector.shape_cast %25 : vector<8xf32> to vector<8x1xf32>
    %27 = vector.broadcast %26 : vector<8x1xf32> to vector<8x128xf32>
    %28 = arith.divf %24, %27 : vector<8x128xf32>
    %c4_i32_13 = arith.constant 4 : i32
    %29 = vector.broadcast %c4_i32_13 : i32 to vector<8x128xi32>
    %30 = arith.cmpi eq, %15, %29 : vector<8x128xi32>
    %31 = arith.select %30, %14, %28 : vector<8x128xi1>, vector<8x128xf32>
    %32 = vector.extract_strided_slice %31 {offsets = [0, 0], sizes = [8, 8], strides = [1, 1]} : vector<8x128xf32> to vector<8x8xf32>
    %c0_14 = arith.constant 0 : index
    %c0_15 = arith.constant 0 : index
    %33 = vector.load %arg5[%c0_14, %c0_15] : memref<8x8xf32, #tpu.memory_space<vmem>>, vector<8x8xf32>
    tpu.vector_store %arg5[%c0_14, %c0_15], %32 {strides = array<i32>} : memref<8x8xf32, #tpu.memory_space<vmem>>, vector<8x8xf32>,
    return
  }
  func.func @transform_0(%arg0: i32) -> (i32, i32) {
    %c0_i32 = arith.constant 0 : i32
    %c0_i32_0 = arith.constant 0 : i32
    return %arg0, %c0_i32 : i32, i32
  }
  func.func @transform_1(%arg0: i32) -> (i32, i32) {
    %c0_i32 = arith.constant 0 : i32
    %c0_i32_0 = arith.constant 0 : i32
    %c0_i32_1 = arith.constant 0 : i32
    return %c0_i32, %c0_i32_0 : i32, i32
  }
  func.func @transform_2(%arg0: i32) -> (i32, i32) {
    %c0_i32 = arith.constant 0 : i32
    %c0_i32_0 = arith.constant 0 : i32
    %c0_i32_1 = arith.constant 0 : i32
    return %c0_i32, %c0_i32_0 : i32, i32
  }
  func.func @transform_3(%arg0: i32) -> (i32, i32) {
    %c0_i32 = arith.constant 0 : i32
    %c0_i32_0 = arith.constant 0 : i32
    %c0_i32_1 = arith.constant 0 : i32
    return %c0_i32, %c0_i32_0 : i32, i32
  }
  func.func @transform_4(%arg0: i32) -> (i32, i32) {
    %c0_i32 = arith.constant 0 : i32
    %c0_i32_0 = arith.constant 0 : i32
    return %arg0, %c0_i32 : i32, i32
  }
}

</mosaic_0001>

<llo_original>
// kernel: tpu_custom_call.1
$region0: #{tpu_custom_call.1}
  #allocation0 [shape = 'u32[]', space=smem, size = 0x4, offset = 0x4, fixed_abs, tag = 'smem constant byte address 0x4 - core index']
  #allocation1 [shape = 'u32[144,128]{1,0:T(1,128)}', space=vmem, size = 0x12000, scoped, tag = 'internal scratch']
  %s0 = inlined_call_operand.hbm [shape: f32[8,32], index: 0, kind: input, shape index: {}]
  %s1 = inlined_call_operand.hbm [shape: bf16[32,128], index: 1, kind: input, shape index: {}]
  %s2 = inlined_call_operand.hbm [shape: bf16[128,128], index: 2, kind: input, shape index: {}]
  %s3 = inlined_call_operand.vmem [shape: f32[2,128], index: 3, kind: input, shape index: {}]
  %s4 = inlined_call_operand.hbm [shape: f32[8,8], index: 4, kind: output, shape index: {}]
  %s5 = sld [smem:[#allocation0]]
  $region38: #{tpu_custom_call.1} parent=0
    _
  %s7 = ssub.s32 1, %s5
  %s8 = scalar_select 0, %s7, %s5
  $region1: #{tpu_custom_call.1} parent=0
    #allocation2 [shape = 'u8[4096]{0}', space=vmem, size = 0x1000, scoped, tag = 'input window, operand 0, single buffered']
    #allocation3 [shape = 's32[1]{0}', space=sflag, size = 0x4, scoped, tag = 'scoped memory for tpu_custom_call.1']
    #allocation4 [shape = 's32[1]{0}', space=sflag, size = 0x4, scoped, tag = 'scoped memory for tpu_custom_call.1']
    #allocation5 [shape = 'u8[8192]{0}', space=vmem, size = 0x2000, scoped, tag = 'input window, operand 1, single buffered']
    #allocation6 [shape = 's32[1]{0}', space=sflag, size = 0x4, scoped, tag = 'scoped memory for tpu_custom_call.1']
    #allocation7 [shape = 'u8[32768]{0}', space=vmem, size = 0x8000, scoped, tag = 'input window, operand 2, single buffered']
    #allocation8 [shape = 'u8[4096]{0}', space=vmem, size = 0x1000, scoped, tag = 'output window, operand 0, single buffered']
    %9 = vsyncpa [#allocation3], 0
    %10 = vsyncpa [#allocation6], 0
    %11 = vsyncpa [#allocation4], 0
    // Predicated region
    $region2: #{tpu_custom_call.1} parent=1 // pred_check
      _
    $region3: #{tpu_custom_call.1} parent=1 // pred_check_branch
      %13 = sbr.rel (0) target = $region5
    $region4: #{tpu_custom_call.1} parent=1 // pred_region
      %s15 = ssub.s32 128, 128
      %16 = vsyncadd [#allocation3], %s15
      %s18 = sshll.u32 [#allocation2], 4
      %s19 = int_to_ptr.vmem [resolvable:$true] %s18
      %21 = dma.hbm_to_vmem [thread:$0]  %s0, 128, %s19, [#allocation3]
    $region5: #{tpu_custom_call.1} parent=1 // pred_fallthru
      _
    // Predicated region
    $region6: #{tpu_custom_call.1} parent=1 // pred_check
      _
    $region7: #{tpu_custom_call.1} parent=1 // pred_check_branch
      %23 = sbr.rel (0) target = $region9
    $region8: #{tpu_custom_call.1} parent=1 // pred_region
      %s25 = ssub.s32 256, 256
      %26 = vsyncadd [#allocation6], %s25
      %s27 = sshll.u32 [#allocation5], 4
      %s28 = int_to_ptr.vmem [resolvable:$true] %s27
      %33 = dma.hbm_to_vmem [thread:$0]  %s1, 256, %s28, [#allocation6], 64, 64, 4
    $region9: #{tpu_custom_call.1} parent=1 // pred_fallthru
      _
    // Predicated region
    $region10: #{tpu_custom_call.1} parent=1 // pred_check
      _
    $region11: #{tpu_custom_call.1} parent=1 // pred_check_branch
      %35 = sbr.rel (0) target = $region13
    $region12: #{tpu_custom_call.1} parent=1 // pred_region
      %s37 = ssub.s32 1024, 1024
      %38 = vsyncadd [#allocation6], %s37
      %s39 = sshll.u32 [#allocation7], 4
      %s40 = int_to_ptr.vmem [resolvable:$true] %s39
      %45 = dma.hbm_to_vmem [thread:$0]  %s2, 1024, %s40, [#allocation6], 64, 64, 4
    $region13: #{tpu_custom_call.1} parent=1 // pred_fallthru
      _
    // Predicated region
    $region14: #{tpu_custom_call.1} parent=1 // pred_check
      _
    $region15: #{tpu_custom_call.1} parent=1 // pred_check_branch
      %47 = sbr.rel (0) target = $region17
    $region16: #{tpu_custom_call.1} parent=1 // pred_region
      _
    $region17: #{tpu_custom_call.1} parent=1 // pred_fallthru
      _
    // Predicated region
    $region18: #{tpu_custom_call.1} parent=1 // pred_check
      _
    $region19: #{tpu_custom_call.1} parent=1 // pred_check_branch
      %49 = sbr.rel (0) target = $region21
    $region20: #{tpu_custom_call.1} parent=1 // pred_region
      %50 = dma.done [#allocation3], 128
    $region21: #{tpu_custom_call.1} parent=1 // pred_fallthru
      _
    // Predicated region
    $region22: #{tpu_custom_call.1} parent=1 // pred_check
      _
    $region23: #{tpu_custom_call.1} parent=1 // pred_check_branch
      %52 = sbr.rel (0) target = $region25
    $region24: #{tpu_custom_call.1} parent=1 // pred_region
      %53 = dma.done [#allocation6], 256
    $region25: #{tpu_custom_call.1} parent=1 // pred_fallthru
      _
    // Predicated region
    $region26: #{tpu_custom_call.1} parent=1 // pred_check
      _
    $region27: #{tpu_custom_call.1} parent=1 // pred_check_branch
      %55 = sbr.rel (0) target = $region29
    $region28: #{tpu_custom_call.1} parent=1 // pred_region
      %56 = dma.done [#allocation6], 1024
    $region29: #{tpu_custom_call.1} parent=1 // pred_fallthru
      _
    %v58 = vld [vmem:[#allocation2] sm:$0xff]
    %v59 = vpack.c.bf16 %v58, %v58
    %v60 = vld [vmem:[%s3] sm:$0x1]
    %v61 = vld [vmem:[%s3 + $0x1] sm:$0x1]
    %v62 = vld [vmem:[#allocation5] sm:$0xf]
    %v63 = vld [vmem:[#allocation5 + $0x4] sm:$0xf]
    %v64 = vld [vmem:[#allocation5 + $0x8] sm:$0xf]
    %v65 = vld [vmem:[#allocation5 + $0xc] sm:$0xf]
    %v66 = vlaneseq
    %v67 = vshrl.u32 %v66, 7
    %v68 = vsub.s32 0, %v67
    %v69 = vrot.slane %v60, %v68
    %v74 = vunpack.c.l.b16 %v62
    %v75 = vunpack.c.l.b16 %v63
    %v76 = vunpack.c.l.b16 %v64
    %v77 = vunpack.c.l.b16 %v65
    %v78 = vpack.c.b16 %v75, %v74
    %v79 = vpack.c.b16 %v77, %v76
    %vm82 = vcmask 261120
    %v84 = vsel %vm82, %v59, 0
    %86 = vmatprep.subr.bf16.mxu0 0
    %87 = vmatpush1.bf16.msra.mxu0 %v78
    %88 = vmatprep.subr.bf16.mxu0 0
    %89 = vmatpush1.bf16.msra.mxu0 %v79
    %90 = vmatprep.subr.bf16.mxu0 0
    %91 = vmatpush1.bf16.msra.mxu0 0
    %92 = vmatprep.subr.bf16.mxu0 0
    %93 = vmatpush1.bf16.msra.mxu0 0
    %94 = vmatprep.subr.bf16.mxu0 0
    %95 = vmatpush1.bf16.msra.mxu0 0
    %96 = vmatprep.subr.bf16.mxu0 0
    %97 = vmatpush1.bf16.msra.mxu0 0
    %98 = vmatprep.subr.bf16.mxu0 0
    %99 = vmatpush1.bf16.msra.mxu0 0
    %100 = vmatprep.subr.bf16.mxu0 0
    %101 = vmatpush1.bf16.msra.mxu0 0
    %102 = vmatprep.subr.bf16.mxu0 0
    %103 = vmatpush1.bf16.msra.mxu0 0
    %104 = vmatprep.subr.bf16.mxu0 0
    %105 = vmatpush1.bf16.msra.mxu0 0
    %106 = vmatprep.subr.bf16.mxu0 0
    %107 = vmatpush1.bf16.msra.mxu0 0
    %108 = vmatprep.subr.bf16.mxu0 0
    %109 = vmatpush1.bf16.msra.mxu0 0
    %110 = vmatprep.subr.bf16.mxu0 0
    %111 = vmatpush1.bf16.msra.mxu0 0
    %112 = vmatprep.subr.bf16.mxu0 0
    %113 = vmatpush1.bf16.msra.mxu0 0
    %114 = vmatprep.subr.bf16.mxu0 0
    %115 = vmatpush1.bf16.msra.mxu0 0
    %116 = vmatprep.subr.bf16.mxu0 0
    %117 = vmatpush1.bf16.msra.mxu0 0
    %118 = vmatprep.mubr.bf16.mxu0 0
    %119 = vmatmul.mubr.bf16.gmra.mrb[0].mxu0 %v84
    %v120 = vpop.f32.mrb[0].mxu0
    %v121 = vadd.f32 %v69, %v120
    %v122 = vpop.f32.mrb[0].mxu0
    %v123 = vpop.f32.mrb[0].mxu0
    %v124 = vpop.f32.mrb[0].mxu0
    %125 = vdwg.mxu0
    %v126 = vmax.f32 %v121, 0.0
    %v127 = vpack.c.bf16 %v126, %v126
    %v128 = vld [vmem:[#allocation7] sm:$0xf]
    %v129 = vld [vmem:[#allocation7 + $0x4] sm:$0xf]
    %v130 = vld [vmem:[#allocation7 + $0x8] sm:$0xf]
    %v131 = vld [vmem:[#allocation7 + $0xc] sm:$0xf]
    %v132 = vld [vmem:[#allocation7 + $0x10] sm:$0xf]
    %v133 = vld [vmem:[#allocation7 + $0x14] sm:$0xf]
    %v134 = vld [vmem:[#allocation7 + $0x18] sm:$0xf]
    %v135 = vld [vmem:[#allocation7 + $0x1c] sm:$0xf]
    %v136 = vld [vmem:[#allocation7 + $0x20] sm:$0xf]
    %v137 = vld [vmem:[#allocation7 + $0x24] sm:$0xf]
    %v138 = vld [vmem:[#allocation7 + $0x28] sm:$0xf]
    %v139 = vld [vmem:[#allocation7 + $0x2c] sm:$0xf]
    %v140 = vld [vmem:[#allocation7 + $0x30] sm:$0xf]
    %v141 = vld [vmem:[#allocation7 + $0x34] sm:$0xf]
    %v142 = vld [vmem:[#allocation7 + $0x38] sm:$0xf]
    %v143 = vld [vmem:[#allocation7 + $0x3c] sm:$0xf]
    %v144 = vlaneseq
    %v145 = vshrl.u32 %v144, 7
    %v146 = vsub.s32 0, %v145
    %v147 = vrot.slane %v61, %v146
    %v164 = vunpack.c.l.b16 %v128
    %v165 = vunpack.c.l.b16 %v129
    %v166 = vunpack.c.l.b16 %v130
    %v167 = vunpack.c.l.b16 %v131
    %v168 = vunpack.c.l.b16 %v132
    %v169 = vunpack.c.l.b16 %v133
    %v170 = vunpack.c.l.b16 %v134
    %v171 = vunpack.c.l.b16 %v135
    %v172 = vunpack.c.l.b16 %v136
    %v173 = vunpack.c.l.b16 %v137
    %v174 = vunpack.c.l.b16 %v138
    %v175 = vunpack.c.l.b16 %v139
    %v176 = vunpack.c.l.b16 %v140
    %v177 = vunpack.c.l.b16 %v141
    %v178 = vunpack.c.l.b16 %v142
    %v179 = vunpack.c.l.b16 %v143
    %v180 = vpack.c.b16 %v165, %v164
    %v181 = vpack.c.b16 %v167, %v166
    %v182 = vpack.c.b16 %v169, %v168
    %v183 = vpack.c.b16 %v171, %v170
    %v184 = vpack.c.b16 %v173, %v172
    %v185 = vpack.c.b16 %v175, %v174
    %v186 = vpack.c.b16 %v177, %v176
    %v187 = vpack.c.b16 %v179, %v178
    %196 = vmatprep.subr.bf16.mxu0 0
    %197 = vmatpush1.bf16.msra.mxu0 %v180
    %198 = vmatprep.subr.bf16.mxu0 0
    %199 = vmatpush1.bf16.msra.mxu0 %v181
    %200 = vmatprep.subr.bf16.mxu0 0
    %201 = vmatpush1.bf16.msra.mxu0 %v182
    %202 = vmatprep.subr.bf16.mxu0 0
    %203 = vmatpush1.bf16.msra.mxu0 %v183
    %204 = vmatprep.subr.bf16.mxu0 0
    %205 = vmatpush1.bf16.msra.mxu0 %v184
    %206 = vmatprep.subr.bf16.mxu0 0
    %207 = vmatpush1.bf16.msra.mxu0 %v185
    %208 = vmatprep.subr.bf16.mxu0 0
    %209 = vmatpush1.bf16.msra.mxu0 %v186
    %210 = vmatprep.subr.bf16.mxu0 0
    %211 = vmatpush1.bf16.msra.mxu0 %v187
    %212 = vmatprep.subr.bf16.mxu0 0
    %213 = vmatpush1.bf16.msra.mxu0 0
    %214 = vmatprep.subr.bf16.mxu0 0
    %215 = vmatpush1.bf16.msra.mxu0 0
    %216 = vmatprep.subr.bf16.mxu0 0
    %217 = vmatpush1.bf16.msra.mxu0 0
    %218 = vmatprep.subr.bf16.mxu0 0
    %219 = vmatpush1.bf16.msra.mxu0 0
    %220 = vmatprep.subr.bf16.mxu0 0
    %221 = vmatpush1.bf16.msra.mxu0 0
    %222 = vmatprep.subr.bf16.mxu0 0
    %223 = vmatpush1.bf16.msra.mxu0 0
    %224 = vmatprep.subr.bf16.mxu0 0
    %225 = vmatpush1.bf16.msra.mxu0 0
    %226 = vmatprep.subr.bf16.mxu0 0
    %227 = vmatpush1.bf16.msra.mxu0 0
    %228 = vmatprep.mubr.bf16.mxu0 0
    %229 = vmatmul.mubr.bf16.gmra.mrb[0].mxu0 %v127
    %v230 = vpop.f32.mrb[0].mxu0
    %v231 = vadd.f32 %v147, %v230
    %v232 = vpop.f32.mrb[0].mxu0
    %v233 = vpop.f32.mrb[0].mxu0
    %v234 = vpop.f32.mrb[0].mxu0
    %235 = vdwg.mxu0
    %v236 = vlaneseq
    %v237 = vand.u32 %v236, 127
    %vm238 = vcmp.lt.s32.totalorder %v237, 4
    %v239 = vsel %vm238, %v231, -1e+30
    %240 = vmax.xlane.f32.xlu0 %v239
    %v241 = vpop.xlane.xlu0 %240
    %v242 = vsub.f32 %v239, %v241
    %v243 = vmul.f32 %v242, 1.442695
    %v244 = vpow.pop %v243
    %245 = vadd.xlane.f32.xlu0 %v244
    %v246 = vpop.xlane.xlu0 %245
    %v247 = vrcp.pop %v246
    %v248 = vmul.f32 %v244, %v247
    %vm249 = vcmp.eq.s32.totalorder %v237, 4
    %v250 = vsel %vm249, %v231, %v248
    %vm251 = vcmask 64512
    %252 = vst.msk [vmem:[#allocation8] sm:$0xff] %vm251, %v250
    // Predicated region
    $region30: #{tpu_custom_call.1} parent=1 // pred_check
      _
    $region31: #{tpu_custom_call.1} parent=1 // pred_check_branch
      %254 = sbr.rel (0) target = $region33
    $region32: #{tpu_custom_call.1} parent=1 // pred_region
      %s256 = ssub.s32 128, 128
      %257 = vsyncadd [#allocation4], %s256
      %s259 = sshll.u32 [#allocation8], 4
      %s260 = int_to_ptr.vmem [resolvable:$true] %s259
      %262 = dma.vmem_to_hbm [thread:$0]  %s260, 128, %s4, [#allocation4]
    $region33: #{tpu_custom_call.1} parent=1 // pred_fallthru
      _
    // Predicated region
    $region34: #{tpu_custom_call.1} parent=1 // pred_check
      _
    $region35: #{tpu_custom_call.1} parent=1 // pred_check_branch
      %264 = sbr.rel (0) target = $region37
    $region36: #{tpu_custom_call.1} parent=1 // pred_region
      %265 = dma.done [#allocation4], 128
    $region37: #{tpu_custom_call.1} parent=1 // pred_fallthru
      _
    %266 = vsyncpa [#allocation3], 1
    %267 = vsyncpa [#allocation6], 1
    %268 = vsyncpa [#allocation4], 1

</llo_original>
